<compile_context>
chip_gen: v7x
topology: tpu7x:2x2x1
jax: 0.10.0
libtpu: 0.0.40
codegen_flags: <defaults>
</compile_context>

<pallas_src>
import functools

import jax
import jax.numpy as jnp
from jax import lax
from jax.experimental import pallas as pl
from jax.experimental.pallas import tpu as pltpu

_LANE = 128
_SUBLANE = 8
_NSTAT = 4  # columns: intersect, pred-mass, target-mass, xent numerator


def _round_up(x, m):
    return (x + m - 1) // m * m


def _round_down(x, m):
    return x // m * m


def _vmem_plan():
    """Generation-aware (double-buffered input-block budget, vmem_limit_bytes)."""
    cap = None
    try:
        cap = getattr(pltpu.get_tpu_info(), "vmem_capacity_bytes", None)
    except Exception:
        cap = None
    if not cap:
        # Unknown part -> conservative, v7x-safe defaults.
        return 8 * 1024 * 1024, 32 * 1024 * 1024
    budget = min(24 * 1024 * 1024, max(4 * 1024 * 1024, cap // 6))
    limit = min(cap * 3 // 4, max(32 * 1024 * 1024, 3 * budget))
    limit = max(limit, 2 * budget + 2 * 1024 * 1024)
    limit = min(limit, cap)
    return budget, limit


def _dice_xent_stats_kernel(pred_ref, tgt_ref, out_ref, *, hw, tile, chunk,
                            n_chunks_full, n_chunks_last, masked):
    """Per-class sufficient statistics for SoftDice + CrossEntropy.

    Block layout (classes on sublanes, pixels on lanes):
      pred_ref: (C, tile)  logits for one lane-tile of one image
      tgt_ref:  (1, tile)  int32 class indices
      out_ref:  (C, 4)     per-image accumulator, resident across the tile axis:
        col 0: sum_pix softmax(pred)[c] * [target==c]        (dice intersection)
        col 1: sum_pix softmax(pred)[c]                       (dice pred mass)
        col 2: sum_pix [target==c]                            (dice target mass)
        col 3: sum_pix -log_softmax(pred)[c] * [target==c]    (xent numerator)
    """
    t = pl.program_id(1)

    @pl.when(t == 0)
    def _init():
        out_ref[...] = jnp.zeros_like(out_ref)

    num_classes = out_ref.shape[0]
    tile_base = t * tile

    def accumulate(n_chunks, do_mask):
        # Loop-invariant iotas hoisted out of the chunk loop (JAX does not CSE
        # broadcast_in_dim; regenerating them per chunk is pure VALU waste).
        cls = lax.broadcasted_iota(jnp.int32, (num_classes, chunk), 0)
        lane = lax.broadcasted_iota(jnp.int32, (1, chunk), 1) if do_mask else None

        def body(j, carry):
            i_acc, p_acc, g_acc, lp_acc = carry
            off = pl.multiple_of(j * chunk, chunk)
            logits = pred_ref[:, pl.ds(off, chunk)].astype(jnp.float32)  # (C, chunk)
            tgt = tgt_ref[:, pl.ds(off, chunk)]                          # (1, chunk)

            if do_mask:
                valid = (tile_base + off + lane) < hw                    # (1, chunk)
                # kill unspecified out-of-bounds data before max/exp
                logits = jnp.where(valid, logits, 0.0)

            # numerically-stable softmax / log-softmax over the class (sublane) axis
            m = jnp.max(logits, axis=0, keepdims=True)                   # (1, chunk)
            z = logits - m
            ez = jnp.exp(z)
            sez = jnp.sum(ez, axis=0, keepdims=True)                     # (1, chunk)
            p = ez * (1.0 / sez)          # exact divide, only over (1, chunk)
            log_p = z - jnp.log(sez)

            hit = cls == tgt                                             # (C, chunk)
            if do_mask:
                hit = jnp.logical_and(hit, valid)
                p = jnp.where(valid, p, 0.0)

            # Accumulate (C, chunk) partials; lane reduction is done once per
            # tile after the loop (cheaper than 4 cross-lane reduces per chunk).
            i_acc = i_acc + jnp.where(hit, p, 0.0)
            p_acc = p_acc + p
            g_acc = g_acc + jnp.where(hit, 1.0, 0.0)
            lp_acc = lp_acc + jnp.where(hit, log_p, 0.0)
            return i_acc, p_acc, g_acc, lp_acc

        zero = jnp.zeros((num_classes, chunk), jnp.float32)
        unroll = n_chunks if n_chunks <= 8 else 4
        i_acc, p_acc, g_acc, lp_acc = lax.fori_loop(
            0, n_chunks, body, (zero, zero, zero, zero), unroll=unroll)

        i_sum = jnp.sum(i_acc, axis=1, keepdims=True)
        p_sum = jnp.sum(p_acc, axis=1, keepdims=True)
        g_sum = jnp.sum(g_acc, axis=1, keepdims=True)
        x_sum = -jnp.sum(lp_acc, axis=1, keepdims=True)

        # Merge the four (C, 1) partials into one (C, 4) update -> a single
        # accumulator read-modify-write per grid step.
        col = lax.broadcasted_iota(jnp.int32, (1, out_ref.shape[1]), 1)
        update = (jnp.where(col == 0, i_sum, 0.0)
                  + jnp.where(col == 1, p_sum, 0.0)
                  + jnp.where(col == 2, g_sum, 0.0)
                  + jnp.where(col == 3, x_sum, 0.0))
        out_ref[...] += update

    if masked:
        last = pl.num_programs(1) - 1

        # Only the ragged last tile pays for the validity mask (and only its
        # valid chunks are visited); every other tile runs the lean loop.
        @pl.when(t != last)
        def _full_tiles():
            accumulate(n_chunks_full, do_mask=False)

        @pl.when(t == last)
        def _ragged_tile():
            accumulate(n_chunks_last, do_mask=True)
    else:
        accumulate(n_chunks_full, do_mask=False)


def dice_xent_loss(pred, target, *, dice_weight=1.0, xent_weight=1.0,
                   smooth=1.0, max_block_bytes=None):
    """pred: (N, C, H, W) float logits, target: (N, H, W) int class indices.

    Targets are assumed to lie in [0, C); there is no ignore_index (matches
    torch.nn.CrossEntropyLoss defaults).  pred may be bf16 (halves HBM traffic,
    useful on v5e); compute is f32 in-kernel.
    """
    N, C, H, W = pred.shape
    HW = H * W

    # Free reshapes only -- no transpose, no padding copies of pred/target.
    pred3d = pred.reshape(N, C, HW)
    tgt3d = target.reshape(N, 1, HW).astype(jnp.int32)

    C8 = _round_up(C, _SUBLANE)  # sublane-padded class count (VMEM layout)

    default_budget, vmem_limit = _vmem_plan()
    if max_block_bytes is None:
        max_block_bytes = default_budget
    else:
        vmem_limit = max(vmem_limit, 2 * max_block_bytes + 2 * 1024 * 1024)

    # Inner compute chunk (lanes): keeps each (C8, chunk) f32 temporary at
    # ~4 vregs so the inner loop stays well inside the 64-vreg file (no spills).
    chunk = max(_LANE, min(512, _round_down(4096 // C8, _LANE)))

    if HW <= chunk:
        chunk = HW
        tile = HW                 # full extent: always a legal block shape
        num_tiles = 1
        n_chunks_full = 1
        n_chunks_last = 1
        masked = False
    else:
        # Size the DMA tile from a VMEM budget for the double-buffered input
        # blocks (pred padded to C8 sublanes, int32 targets padded to 8).
        bytes_per_lane = 2 * 4 * (C8 + _SUBLANE)
        budget_tile = _round_down(max(max_block_bytes // bytes_per_lane, chunk), chunk)
        tile = max(chunk, min(budget_tile, _round_down(HW, chunk)))   # tile <= HW
        num_tiles = pl.cdiv(HW, tile)
        rem = HW - (num_tiles - 1) * tile
        masked = rem != tile       # ragged last tile handled in-kernel
        n_chunks_full = tile // chunk
        n_chunks_last = pl.cdiv(rem, chunk)

    kernel = functools.partial(
        _dice_xent_stats_kernel, hw=HW, tile=tile, chunk=chunk,
        n_chunks_full=n_chunks_full, n_chunks_last=n_chunks_last, masked=masked)

    stats = pl.pallas_call(
        kernel,
        out_shape=jax.ShapeDtypeStruct((N, C, _NSTAT), jnp.float32),
        grid_spec=pltpu.PrefetchScalarGridSpec(
            num_scalar_prefetch=0,
            grid=(N, num_tiles),
            in_specs=[
                pl.BlockSpec((None, C, tile), lambda n, t: (n, 0, t)),
                pl.BlockSpec((None, 1, tile), lambda n, t: (n, 0, t)),
            ],
            out_specs=pl.BlockSpec((None, C, _NSTAT), lambda n, t: (n, 0, 0)),
        ),
        compiler_params=pltpu.CompilerParams(
            # batch axis parallel -> v7x's two TensorCores reduce disjoint images;
            # pixel-tile axis is the accumulation axis.
            dimension_semantics=("parallel", "arbitrary"),
            vmem_limit_bytes=vmem_limit,
        ),
    )(pred3d, tgt3d)

    # Sum the per-image partial statistics (also improves f32 accumulation).
    stats = jnp.sum(stats, axis=0)                       # (C, 4)
    intersect = stats[:, 0]
    psum = stats[:, 1]
    gsum = stats[:, 2]
    xent_sum = stats[:, 3]

    # TODO(synk): SoftDiceV2 source was not provided; this implements the standard
    # soft-Dice (softmax probs, per-class sums over batch+spatial, smooth=1,
    # loss = 1 - mean_c dice_c).
    dice_per_class = (2.0 * intersect + smooth) / (psum + gsum + smooth)
    dice_loss = 1.0 - jnp.mean(dice_per_class)

    # torch.nn.CrossEntropyLoss(weight=None, reduction='mean'): mean over N*H*W.
    xent = jnp.sum(xent_sum) / (N * HW)

    return dice_loss * dice_weight + xent * xent_weight


def _reference(pred, target, dice_weight=1.0, xent_weight=1.0, smooth=1.0):
    N, C, H, W = pred.shape
    logits = jnp.transpose(pred, (0, 2, 3, 1)).reshape(-1, C).astype(jnp.float32)
    tgt = target.reshape(-1).astype(jnp.int32)
    log_p = jax.nn.log_softmax(logits, axis=-1)
    p = jnp.exp(log_p)
    onehot = jax.nn.one_hot(tgt, C, dtype=jnp.float32)
    intersect = jnp.sum(p * onehot, axis=0)
    psum = jnp.sum(p, axis=0)
    gsum = jnp.sum(onehot, axis=0)
    dice = 1.0 - jnp.mean((2.0 * intersect + smooth) / (psum + gsum + smooth))
    xent = jnp.mean(-jnp.sum(onehot * log_p, axis=-1))
    return dice * dice_weight + xent * xent_weight


if __name__ == "__main__":
    k1, k2, k3, k4, k5, k6 = jax.random.split(jax.random.PRNGKey(0), 6)
    loss_fn = jax.jit(dice_xent_loss)

    # Small NCHW test (single lane-tile per image, unmasked path).
    N, C, H, W = 2, 4, 16, 16
    pred = jax.random.normal(k1, (N, C, H, W), dtype=jnp.float32)
    target = jax.random.randint(k2, (N, H, W), 0, C, dtype=jnp.int32)
    loss = jax.block_until_ready(loss_fn(pred, target))
    ref = _reference(pred, target)
    assert jnp.allclose(loss, ref, rtol=1e-5, atol=1e-4), (loss, ref)

    # Larger spatial size: exercises the multi-chunk unrolled loop and the
    # masked ragged last tile (HW=2304, tile=2048, last tile 256 valid pixels).
    N2, C2, H2, W2 = 2, 4, 48, 48
    pred2 = jax.random.normal(k3, (N2, C2, H2, W2), dtype=jnp.float32)
    target2 = jax.random.randint(k4, (N2, H2, W2), 0, C2, dtype=jnp.int32)
    loss2 = jax.block_until_ready(loss_fn(pred2, target2))
    ref2 = _reference(pred2, target2)
    assert jnp.allclose(loss2, ref2, rtol=1e-5, atol=1e-4), (loss2, ref2)

    # Odd class count / non-128-multiple spatial size (full-extent block path).
    N3, C3, H3, W3 = 1, 3, 12, 12
    pred3 = jax.random.normal(k5, (N3, C3, H3, W3), dtype=jnp.float32)
    target3 = jax.random.randint(k6, (N3, H3, W3), 0, C3, dtype=jnp.int32)
    loss3 = jax.block_until_ready(loss_fn(pred3, target3))
    ref3 = _reference(pred3, target3)
    assert jnp.allclose(loss3, ref3, rtol=1e-5, atol=1e-4), (loss3, ref3)

    print("KERNEL_OK")
</pallas_src>

<mosaic_0001>
module attributes {stable_mosaic.version = 11 : i64} {
  func.func @_dice_xent_stats_kernel(%arg0: i32, %arg1: i32, %arg2: memref<1x4x256xf32, #tpu.memory_space<vmem>>, %arg3: memref<1x1x256xi32, #tpu.memory_space<vmem>>, %arg4: memref<1x4x4xf32, #tpu.memory_space<vmem>>) attributes {dimension_semantics = [#tpu.dimension_semantics<parallel>, #tpu.dimension_semantics<arbitrary>], iteration_bounds = array<i64: 2, 1>, scalar_prefetch = 0 : i64, scratch_operands = 0 : i64, tpu.core_type = #tpu.core_type<tc>, window_params = [{transform_indices = @transform_0, window_bounds = array<i64: 1, 4, 256>}, {transform_indices = @transform_1, window_bounds = array<i64: 1, 1, 256>}, {transform_indices = @transform_2, window_bounds = array<i64: 1, 4, 4>}]} {
    %c0_i32 = arith.constant 0 : i32
    %0 = arith.cmpi eq, %arg1, %c0_i32 : i32
    %1 = arith.extui %0 : i1 to i32
    %c0_i32_0 = arith.constant 0 : i32
    %2 = arith.cmpi ne, %1, %c0_i32_0 : i32
    scf.if %2 {
      %cst_29 = arith.constant 0.000000e+00 : f32
      %92 = vector.broadcast %cst_29 : f32 to vector<4x4xf32>
      %c0_30 = arith.constant 0 : index
      %c0_31 = arith.constant 0 : index
      %c0_32 = arith.constant 0 : index
      %93 = vector.load %arg4[%c0_30, %c0_31, %c0_32] : memref<1x4x4xf32, #tpu.memory_space<vmem>>, vector<1x4x4xf32>
      %94 = vector.shape_cast %93 : vector<1x4x4xf32> to vector<4x4xf32>
      %95 = vector.shape_cast %92 : vector<4x4xf32> to vector<1x4x4xf32>
      tpu.vector_store %arg4[%c0_30, %c0_31, %c0_32], %95 {strides = array<i32>} : memref<1x4x4xf32, #tpu.memory_space<vmem>>, vector<1x4x4xf32>,
    } else {
    }
    %3 = tpu.iota {dimensions = array<i32: 0>} : vector<4x256xi32>
    %cst = arith.constant 0.000000e+00 : f32
    %4 = vector.broadcast %cst : f32 to vector<4x256xf32>
    %c0_i32_1 = arith.constant 0 : i32
    %c256_i32 = arith.constant 256 : i32
    %5 = arith.muli %c0_i32_1, %c256_i32 : i32
    %6 = tpu.assume_multiple %5, 256 : i32
    %c0 = arith.constant 0 : index
    %c0_2 = arith.constant 0 : index
    %7 = arith.index_cast %6 : i32 to index
    %8 = vector.load %arg2[%c0, %c0_2, %7] : memref<1x4x256xf32, #tpu.memory_space<vmem>>, vector<1x4x256xf32>
    %9 = vector.shape_cast %8 : vector<1x4x256xf32> to vector<4x256xf32>
    %c0_3 = arith.constant 0 : index
    %c0_4 = arith.constant 0 : index
    %10 = arith.index_cast %6 : i32 to index
    %11 = vector.load %arg3[%c0_3, %c0_4, %10] : memref<1x1x256xi32, #tpu.memory_space<vmem>>, vector<1x1x256xi32>
    %12 = vector.shape_cast %11 : vector<1x1x256xi32> to vector<1x256xi32>
    %cst_5 = arith.constant dense<0xFF800000> : vector<256xf32>
    %13 = vector.multi_reduction <maximumf>, %9, %cst_5 [0] : vector<4x256xf32> to vector<256xf32>
    %14 = vector.shape_cast %13 : vector<256xf32> to vector<1x256xf32>
    %15 = vector.broadcast %14 : vector<1x256xf32> to vector<4x256xf32>
    %16 = arith.subf %9, %15 : vector<4x256xf32>
    %17 = math.exp %16 : vector<4x256xf32>
    %cst_6 = arith.constant dense<0.000000e+00> : vector<256xf32>
    %18 = vector.multi_reduction <add>, %17, %cst_6 [0] : vector<4x256xf32> to vector<256xf32>
    %19 = vector.shape_cast %18 : vector<256xf32> to vector<1x256xf32>
    %cst_7 = arith.constant 1.000000e+00 : f32
    %20 = vector.broadcast %cst_7 : f32 to vector<1x256xf32>
    %21 = arith.divf %20, %19 : vector<1x256xf32>
    %22 = vector.broadcast %21 : vector<1x256xf32> to vector<4x256xf32>
    %23 = arith.mulf %17, %22 : vector<4x256xf32>
    %24 = math.log %19 : vector<1x256xf32>
    %25 = vector.broadcast %24 : vector<1x256xf32> to vector<4x256xf32>
    %26 = arith.subf %16, %25 : vector<4x256xf32>
    %27 = vector.broadcast %12 : vector<1x256xi32> to vector<4x256xi32>
    %28 = arith.cmpi eq, %3, %27 : vector<4x256xi32>
    %cst_8 = arith.constant 0.000000e+00 : f32
    %29 = vector.broadcast %cst_8 : f32 to vector<4x256xf32>
    %30 = arith.select %28, %23, %29 : vector<4x256xi1>, vector<4x256xf32>
    %31 = arith.addf %4, %30 : vector<4x256xf32>
    %32 = arith.addf %4, %23 : vector<4x256xf32>
    %cst_9 = arith.constant 1.000000e+00 : f32
    %cst_10 = arith.constant 0.000000e+00 : f32
    %33 = vector.broadcast %cst_9 : f32 to vector<4x256xf32>
    %34 = vector.broadcast %cst_10 : f32 to vector<4x256xf32>
    %35 = arith.select %28, %33, %34 : vector<4x256xi1>, vector<4x256xf32>
    %36 = arith.addf %4, %35 : vector<4x256xf32>
    %cst_11 = arith.constant 0.000000e+00 : f32
    %37 = vector.broadcast %cst_11 : f32 to vector<4x256xf32>
    %38 = arith.select %28, %26, %37 : vector<4x256xi1>, vector<4x256xf32>
    %39 = arith.addf %4, %38 : vector<4x256xf32>
    %c1_i32 = arith.constant 1 : i32
    %cst_12 = arith.constant dense<0.000000e+00> : vector<4xf32>
    %40 = vector.multi_reduction <add>, %31, %cst_12 [1] : vector<4x256xf32> to vector<4xf32>
    %41 = vector.shape_cast %40 : vector<4xf32> to vector<4x1xf32>
    %cst_13 = arith.constant dense<0.000000e+00> : vector<4xf32>
    %42 = vector.multi_reduction <add>, %32, %cst_13 [1] : vector<4x256xf32> to vector<4xf32>
    %43 = vector.shape_cast %42 : vector<4xf32> to vector<4x1xf32>
    %cst_14 = arith.constant dense<0.000000e+00> : vector<4xf32>
    %44 = vector.multi_reduction <add>, %36, %cst_14 [1] : vector<4x256xf32> to vector<4xf32>
    %45 = vector.shape_cast %44 : vector<4xf32> to vector<4x1xf32>
    %cst_15 = arith.constant dense<0.000000e+00> : vector<4xf32>
    %46 = vector.multi_reduction <add>, %39, %cst_15 [1] : vector<4x256xf32> to vector<4xf32>
    %47 = vector.shape_cast %46 : vector<4xf32> to vector<4x1xf32>
    %cst_16 = arith.constant 0.000000e+00 : f32
    %48 = vector.broadcast %cst_16 : f32 to vector<4x1xf32>
    %49 = arith.subf %48, %47 : vector<4x1xf32>
    %50 = tpu.iota {dimensions = array<i32: 1>} : vector<1x4xi32>
    %c0_i32_17 = arith.constant 0 : i32
    %51 = vector.broadcast %c0_i32_17 : i32 to vector<1x4xi32>
    %52 = arith.cmpi eq, %50, %51 : vector<1x4xi32>
    %cst_18 = arith.constant 0.000000e+00 : f32
    %53 = vector.shape_cast %52 : vector<1x4xi1> to vector<1x4xi1>
    %54 = vector.broadcast %53 : vector<1x4xi1> to vector<4x4xi1>
    %55 = vector.shape_cast %41 : vector<4x1xf32> to vector<4x1xf32>
    %56 = vector.broadcast %55 : vector<4x1xf32> to vector<4x4xf32>
    %57 = vector.broadcast %cst_18 : f32 to vector<4x4xf32>
    %58 = arith.select %54, %56, %57 : vector<4x4xi1>, vector<4x4xf32>
    %c1_i32_19 = arith.constant 1 : i32
    %59 = vector.broadcast %c1_i32_19 : i32 to vector<1x4xi32>
    %60 = arith.cmpi eq, %50, %59 : vector<1x4xi32>
    %cst_20 = arith.constant 0.000000e+00 : f32
    %61 = vector.shape_cast %60 : vector<1x4xi1> to vector<1x4xi1>
    %62 = vector.broadcast %61 : vector<1x4xi1> to vector<4x4xi1>
    %63 = vector.shape_cast %43 : vector<4x1xf32> to vector<4x1xf32>
    %64 = vector.broadcast %63 : vector<4x1xf32> to vector<4x4xf32>
    %65 = vector.broadcast %cst_20 : f32 to vector<4x4xf32>
    %66 = arith.select %62, %64, %65 : vector<4x4xi1>, vector<4x4xf32>
    %67 = arith.addf %58, %66 : vector<4x4xf32>
    %c2_i32 = arith.constant 2 : i32
    %68 = vector.broadcast %c2_i32 : i32 to vector<1x4xi32>
    %69 = arith.cmpi eq, %50, %68 : vector<1x4xi32>
    %cst_21 = arith.constant 0.000000e+00 : f32
    %70 = vector.shape_cast %69 : vector<1x4xi1> to vector<1x4xi1>
    %71 = vector.broadcast %70 : vector<1x4xi1> to vector<4x4xi1>
    %72 = vector.shape_cast %45 : vector<4x1xf32> to vector<4x1xf32>
    %73 = vector.broadcast %72 : vector<4x1xf32> to vector<4x4xf32>
    %74 = vector.broadcast %cst_21 : f32 to vector<4x4xf32>
    %75 = arith.select %71, %73, %74 : vector<4x4xi1>, vector<4x4xf32>
    %76 = arith.addf %67, %75 : vector<4x4xf32>
    %c3_i32 = arith.constant 3 : i32
    %77 = vector.broadcast %c3_i32 : i32 to vector<1x4xi32>
    %78 = arith.cmpi eq, %50, %77 : vector<1x4xi32>
    %cst_22 = arith.constant 0.000000e+00 : f32
    %79 = vector.shape_cast %78 : vector<1x4xi1> to vector<1x4xi1>
    %80 = vector.broadcast %79 : vector<1x4xi1> to vector<4x4xi1>
    %81 = vector.shape_cast %49 : vector<4x1xf32> to vector<4x1xf32>
    %82 = vector.broadcast %81 : vector<4x1xf32> to vector<4x4xf32>
    %83 = vector.broadcast %cst_22 : f32 to vector<4x4xf32>
    %84 = arith.select %80, %82, %83 : vector<4x4xi1>, vector<4x4xf32>
    %85 = arith.addf %76, %84 : vector<4x4xf32>
    %c0_23 = arith.constant 0 : index
    %c0_24 = arith.constant 0 : index
    %c0_25 = arith.constant 0 : index
    %86 = vector.load %arg4[%c0_23, %c0_24, %c0_25] : memref<1x4x4xf32, #tpu.memory_space<vmem>>, vector<1x4x4xf32>
    %87 = vector.shape_cast %86 : vector<1x4x4xf32> to vector<4x4xf32>
    %88 = arith.addf %87, %85 : vector<4x4xf32>
    %c0_26 = arith.constant 0 : index
    %c0_27 = arith.constant 0 : index
    %c0_28 = arith.constant 0 : index
    %89 = vector.load %arg4[%c0_26, %c0_27, %c0_28] : memref<1x4x4xf32, #tpu.memory_space<vmem>>, vector<1x4x4xf32>
    %90 = vector.shape_cast %89 : vector<1x4x4xf32> to vector<4x4xf32>
    %91 = vector.shape_cast %88 : vector<4x4xf32> to vector<1x4x4xf32>
    tpu.vector_store %arg4[%c0_26, %c0_27, %c0_28], %91 {strides = array<i32>} : memref<1x4x4xf32, #tpu.memory_space<vmem>>, vector<1x4x4xf32>,
    return
  }
  func.func @transform_0(%arg0: i32, %arg1: i32) -> (i32, i32, i32) {
    %c0_i32 = arith.constant 0 : i32
    %c0_i32_0 = arith.constant 0 : i32
    return %arg0, %c0_i32, %arg1 : i32, i32, i32
  }
  func.func @transform_1(%arg0: i32, %arg1: i32) -> (i32, i32, i32) {
    %c0_i32 = arith.constant 0 : i32
    %c0_i32_0 = arith.constant 0 : i32
    return %arg0, %c0_i32, %arg1 : i32, i32, i32
  }
  func.func @transform_2(%arg0: i32, %arg1: i32) -> (i32, i32, i32) {
    %c0_i32 = arith.constant 0 : i32
    %c0_i32_0 = arith.constant 0 : i32
    %c0_i32_1 = arith.constant 0 : i32
    return %arg0, %c0_i32, %c0_i32_0 : i32, i32, i32
  }
}

</mosaic_0001>

<llo_original>
// kernel: dice_xent_loss.1
$region0: #{dice_xent_loss.1}
  #allocation0 [shape = 'u32[]', space=smem, size = 0x4, offset = 0x4, fixed_abs, tag = 'smem constant byte address 0x4 - core index']
  #allocation1 [shape = 'u32[144,128]{1,0:T(1,128)}', space=vmem, size = 0x12000, scoped, tag = 'internal scratch']
  %s0 = inlined_call_operand.vmem [shape: f32[2,4,256], index: 0, kind: input, shape index: {}]
  %s1 = inlined_call_operand.vmem [shape: s32[2,1,256], index: 1, kind: input, shape index: {}]
  %s2 = inlined_call_operand.vmem [shape: f32[2,4,4], index: 2, kind: output, shape index: {}]
  %s3 = sld [smem:[#allocation0]]
  $region45: #{dice_xent_loss.1} parent=0
    _
  %s5 = ssub.s32 1, %s3
  %s6 = scalar_select 0, %s5, %s3
  loop: start=0, step=1, limit=4
  $region2: #{dice_xent_loss.1} parent=0 // loop_pre_header
    _
  $region3: #{dice_xent_loss.1} parent=0 // loop_header
    %s8 = sphi 0, %s12
    %p9 = scmp.ge.s32.totalorder %s8, 4
    %s15 = sphi 0, %s27
    %s16 = sphi 0, %s23
    %s17 = sphi 0, %s15
    %s18 = sphi 0, %s16
    %s19 = sphi 0, %s17
    %s20 = sphi 0, %s18
    %s32 = sphi 0, %s34
    %s35 = sphi 0, %s32
    %s36 = sphi 0, %s35
    %s52 = sphi 0, %s36
    %s60 = sphi 0, %s62
    %s63 = sphi 0, %s60
    %s64 = sphi 0, %s63
    %s80 = sphi 0, %s64
    %s86 = sphi 0, %s88
    %s89 = sphi 0, %s86
    %s90 = sphi 0, %s89
    %s106 = sphi 0, %s90
  $region4: #{dice_xent_loss.1} parent=0 // loop_header_branch
    %11 = sbr.rel (%p9) target = $region8
  $region5: #{dice_xent_loss.1} parent=0 // loop_body
    %s13 = ssub.s32 %s8, 1
    %s14 = ssub.s32 %s8, 2
    %s21 = sadd.s32 1, %s16
    %p22 = scmp.ge.s32.totalorder %s21, 1
    %s23 = scalar_select %p22, 0, %s21
    %s24 = sadd.s32 1, %s15
    %s25 = scalar_select %p22, %s24, %s15
    %p26 = scmp.ge.s32.totalorder %s25, 2
    %s27 = scalar_select %p26, 0, %s25
    %s28 = ssub.s32 %s15, %s27
    %s29 = ssub.s32 %s16, %s23
    %s30 = sor.u32 %s28, %s29
    %p31 = scmp.eq.s32.totalorder %s30, 0
    %s33 = sadd.s32 %s32, 1
    %s34 = scalar_select %p31, %s32, %s33
    %p37 = pneg %p31
    %p38 = scmp.eq.s32.totalorder %s8, 1
    %p39 = por %p37, %p38
    %p40 = scmp.ne.s32.totalorder %s32, %s35
    %p41 = scmp.eq.s32.totalorder %s8, 0
    %p42 = por %p40, %p41
    %p43 = scmp.ne.s32.totalorder %s32, %s35
    %p44 = scmp.eq.s32.totalorder %s13, 1
    %p45 = por %p43, %p44
    %p46 = scmp.ne.s32.totalorder %s35, %s36
    %p47 = scmp.eq.s32.totalorder %s13, 0
    %p48 = por %p46, %p47
    %p49 = scmp.ne.s32.totalorder %s35, %s36
    %p50 = scmp.eq.s32.totalorder %s14, 1
    %p51 = por %p49, %p50
    %p53 = scmp.ne.s32.totalorder %s36, %s52
    %p54 = scmp.eq.s32.totalorder %s14, 0
    %p55 = por %p53, %p54
    %s56 = ssub.s32 %s15, %s27
    %s57 = ssub.s32 %s16, %s23
    %s58 = sor.u32 %s56, %s57
    %p59 = scmp.eq.s32.totalorder %s58, 0
    %s61 = sadd.s32 %s60, 1
    %s62 = scalar_select %p59, %s60, %s61
    %p65 = pneg %p59
    %p66 = scmp.eq.s32.totalorder %s8, 1
    %p67 = por %p65, %p66
    %p68 = scmp.ne.s32.totalorder %s60, %s63
    %p69 = scmp.eq.s32.totalorder %s8, 0
    %p70 = por %p68, %p69
    %p71 = scmp.ne.s32.totalorder %s60, %s63
    %p72 = scmp.eq.s32.totalorder %s13, 1
    %p73 = por %p71, %p72
    %p74 = scmp.ne.s32.totalorder %s63, %s64
    %p75 = scmp.eq.s32.totalorder %s13, 0
    %p76 = por %p74, %p75
    %p77 = scmp.ne.s32.totalorder %s63, %s64
    %p78 = scmp.eq.s32.totalorder %s14, 1
    %p79 = por %p77, %p78
    %p81 = scmp.ne.s32.totalorder %s64, %s80
    %p82 = scmp.eq.s32.totalorder %s14, 0
    %p83 = por %p81, %p82
    %s84 = ssub.s32 %s15, %s27
    %p85 = scmp.eq.s32.totalorder %s84, 0
    %s87 = sadd.s32 %s86, 1
    %s88 = scalar_select %p85, %s86, %s87
    %p91 = pneg %p85
    %p92 = scmp.eq.s32.totalorder %s8, 1
    %p93 = por %p91, %p92
    %p94 = scmp.ne.s32.totalorder %s86, %s89
    %p95 = scmp.eq.s32.totalorder %s8, 0
    %p96 = por %p94, %p95
    %p97 = scmp.ne.s32.totalorder %s86, %s89
    %p98 = scmp.eq.s32.totalorder %s13, 1
    %p99 = por %p97, %p98
    %p100 = scmp.ne.s32.totalorder %s89, %s90
    %p101 = scmp.eq.s32.totalorder %s13, 0
    %p102 = por %p100, %p101
    %p103 = scmp.ne.s32.totalorder %s89, %s90
    %p104 = scmp.eq.s32.totalorder %s14, 1
    %p105 = por %p103, %p104
    %p107 = scmp.ne.s32.totalorder %s90, %s106
    %p108 = scmp.eq.s32.totalorder %s14, 0
    %p109 = por %p107, %p108
    %p110 = scmp.le.s32.totalorder 1, %s8
    %p111 = scmp.lt.s32.totalorder %s8, 3
    %p112 = pnand %p110, %p111
    %p113 = pneg %p112
    // Predicated region
    $region9: #{dice_xent_loss.1} parent=5 // pred_check
      _
    $region10: #{dice_xent_loss.1} parent=5 // pred_check_branch
      %115 = sbr.rel (%p112) target = $region12
    $region11: #{dice_xent_loss.1} parent=5 // pred_region
      %s116 = ssub.s32 %s8, 1
    $region12: #{dice_xent_loss.1} parent=5 // pred_fallthru
      _
    %p117 = scmp.lt.s32.totalorder %s8, 2
    // Predicated region
    $region13: #{dice_xent_loss.1} parent=5 // pred_check
      %p118 = pneg %p117
    $region14: #{dice_xent_loss.1} parent=5 // pred_check_branch
      %120 = sbr.rel (%p118) target = $region16
    $region15: #{dice_xent_loss.1} parent=5 // pred_region
      // Predicated region
      $region17: #{dice_xent_loss.1} parent=15 // pred_check
        %p121 = pneg %p42
      $region18: #{dice_xent_loss.1} parent=15 // pred_check_branch
        %123 = sbr.rel (%p121) target = $region20
      $region19: #{dice_xent_loss.1} parent=15 // pred_region
        %s124 = smul.u32 2, %s16
        %p125 = scmp.lt.s32.totalorder %s15, 1
        %s126 = scalar_select %p125, %s15, 1
        %p127 = scmp.lt.s32.totalorder %s124, 1
        %s128 = scalar_select %p127, %s124, 1
        %s129 = smul.addr %s126, 2
        %s130 = sadd.s32 %s128, %s129
        %s131 = smul.addr %s130, 4
        %s132 = scalar_lea.vmem %s0, %s131
        %s133 = smul.u32 2, %s16
      $region20: #{dice_xent_loss.1} parent=15 // pred_fallthru
        _
      // Predicated region
      $region21: #{dice_xent_loss.1} parent=15 // pred_check
        %p134 = pneg %p70
      $region22: #{dice_xent_loss.1} parent=15 // pred_check_branch
        %136 = sbr.rel (%p134) target = $region24
      $region23: #{dice_xent_loss.1} parent=15 // pred_region
        %s137 = smul.u32 2, %s16
        %p138 = scmp.lt.s32.totalorder %s15, 1
        %s139 = scalar_select %p138, %s15, 1
        %p140 = scmp.lt.s32.totalorder %s137, 1
        %s141 = scalar_select %p140, %s137, 1
        %s142 = smul.addr %s139, 2
        %s143 = sadd.s32 %s141, %s142
        %s144 = scalar_lea.vmem %s1, %s143
        %s145 = smul.u32 2, %s16
      $region24: #{dice_xent_loss.1} parent=15 // pred_fallthru
        _
    $region16: #{dice_xent_loss.1} parent=5 // pred_fallthru
      _
    %p146 = scmp.le.s32.totalorder 1, %s8
    %p147 = scmp.lt.s32.totalorder %s8, 3
    %p148 = pnand %p146, %p147
    %p149 = pneg %p148
    // Predicated region
    $region25: #{dice_xent_loss.1} parent=5 // pred_check
      _
    $region26: #{dice_xent_loss.1} parent=5 // pred_check_branch
      %151 = sbr.rel (%p148) target = $region28
    $region27: #{dice_xent_loss.1} parent=5 // pred_region
      %s152 = ssub.s32 %s8, 1
      %s153 = smul.u32 2, %s18
      %p154 = scmp.lt.s32.totalorder %s17, 1
      %s155 = scalar_select %p154, %s17, 1
      %p156 = scmp.lt.s32.totalorder %s153, 1
      %s157 = scalar_select %p156, %s153, 1
      %s158 = smul.addr %s155, 2
      %s159 = sadd.s32 %s157, %s158
      %s160 = smul.addr %s159, 4
      %s161 = scalar_lea.vmem %s0, %s160
      %p162 = pneg %p48
      %p163 = pneg %p45
      %s164 = smul.u32 2, %s18
      %p165 = scmp.lt.s32.totalorder %s17, 1
      %s166 = scalar_select %p165, %s17, 1
      %p167 = scmp.lt.s32.totalorder %s164, 1
      %s168 = scalar_select %p167, %s164, 1
      %s169 = smul.addr %s166, 2
      %s170 = sadd.s32 %s168, %s169
      %s171 = scalar_lea.vmem %s1, %s170
      %p172 = pneg %p76
      %p173 = pneg %p73
      %p174 = pneg %p102
      %p175 = pneg %p99
      %p176 = scmp.lt.s32.totalorder %s17, 1
      %s177 = scalar_select %p176, %s17, 1
      %s178 = smul.addr %s177, 4
      %s179 = scalar_lea.vmem %s2, %s178
      %s180 = smul.u32 2, %s18
      %p181 = scmp.lt.s32.totalorder %s17, 1
      %s182 = scalar_select %p181, %s17, 1
      %p183 = scmp.lt.s32.totalorder %s180, 1
      %s184 = scalar_select %p183, %s180, 1
      %s185 = smul.addr %s182, 2
      %s186 = sadd.s32 %s184, %s185
      %s187 = smul.addr %s186, 4
      %s188 = scalar_lea.vmem %s0, %s187
      %s189 = smul.u32 2, %s18
      %s190 = smul.u32 2, %s18
      %p191 = scmp.lt.s32.totalorder %s17, 1
      %s192 = scalar_select %p191, %s17, 1
      %p193 = scmp.lt.s32.totalorder %s190, 1
      %s194 = scalar_select %p193, %s190, 1
      %s195 = smul.addr %s192, 2
      %s196 = sadd.s32 %s194, %s195
      %s197 = scalar_lea.vmem %s1, %s196
      %s198 = smul.u32 2, %s18
      %p199 = scmp.lt.s32.totalorder %s17, 1
      %s200 = scalar_select %p199, %s17, 1
      %s201 = smul.addr %s200, 4
      %s202 = scalar_lea.vmem %s2, %s201
      %p203 = scmp.eq.s32.totalorder %s18, 0
      // Predicated region
      $region29: #{dice_xent_loss.1} parent=27 // pred_check
        %p204 = pneg %p203
      $region30: #{dice_xent_loss.1} parent=27 // pred_check_branch
        %206 = sbr.rel (%p204) target = $region32
      $region31: #{dice_xent_loss.1} parent=27 // pred_region
        %vm207 = vcmask 27648
        %208 = vst.msk [vmem:[%s202] sm:$0xf] %vm207, 0.0
      $region32: #{dice_xent_loss.1} parent=27 // pred_fallthru
        _
      %v209 = vlaneseq
      %v210 = vshrl.u32 %v209, 7
      %v211 = vld [vmem:[%s188] sm:$0xff]
      %v212 = vld [vmem:[%s197] sm:$0x3]
      %v214 = vcombine.high %v211, %v211
      %vm216 = vcmask 1043456
      %v217 = vsel %vm216, %v211, -inf
      %v218 = vrot.slane %v217, 4
      %v219 = vmax.f32 %v217, %v218
      %v220 = vrot.slane %v219, 2
      %v221 = vmax.f32 %v219, %v220
      %v222 = vrot.slane %v221, 1
      %v223 = vmax.f32 %v221, %v222
      %v224 = vsel %vm216, %v214, -inf
      %v225 = vrot.slane %v224, 4
      %v226 = vmax.f32 %v224, %v225
      %v227 = vrot.slane %v226, 2
      %v228 = vmax.f32 %v226, %v227
      %v229 = vrot.slane %v228, 1
      %v230 = vmax.f32 %v228, %v229
      %v233 = vcombine.low %v223, %v230
      %v235 = vsub.f32 %v211, %v233
      %v236 = vmul.f32 %v235, 1.442695
      %v237 = vpow.pop %v236
      %v239 = vcombine.high %v237, %v237
      %v241 = vsel %vm216, %v237, 0.0
      %v242 = vrot.slane %v241, 4
      %v243 = vadd.f32 %v241, %v242
      %v244 = vrot.slane %v243, 2
      %v245 = vadd.f32 %v243, %v244
      %v246 = vrot.slane %v245, 1
      %v247 = vadd.f32 %v245, %v246
      %v248 = vsel %vm216, %v239, 0.0
      %v249 = vrot.slane %v248, 4
      %v250 = vadd.f32 %v248, %v249
      %v251 = vrot.slane %v250, 2
      %v252 = vadd.f32 %v250, %v251
      %v253 = vrot.slane %v252, 1
      %v254 = vadd.f32 %v252, %v253
      %v255 = vrcp.pop %v247
      %v256 = vmul.f32 1.0, %v255
      %v257 = vrcp.pop %v254
      %v258 = vmul.f32 1.0, %v257
      %v261 = vcombine.low %v256, %v258
      %v263 = vmul.f32 %v237, %v261
      %v264 = vlog2.pop %v247
      %v265 = vmul.f32 %v264, 0.6931472
      %v266 = vlog2.pop %v254
      %v267 = vmul.f32 %v266, 0.6931472
      %v270 = vcombine.low %v265, %v267
      %v272 = vsub.f32 %v235, %v270
      %v273 = vlaneseq
      %v274 = vshrl.u32 %v273, 7
      %v275 = vsub.s32 0, %v274
      %v276 = vrot.slane %v212, %v275
      %v277 = vlaneseq
      %v278 = vshrl.u32 %v277, 7
      %v279 = vsub.s32 1, %v278
      %v280 = vrot.slane %v212, %v279
      %vm281 = vcmp.eq.s32.totalorder %v210, %v276
      %vm282 = vcmp.eq.s32.totalorder %v210, %v280
      %v284 = vcombine.high %v263, %v263
      %v286 = vsel %vm281, %v263, 0.0
      %v287 = vsel %vm282, %v284, 0.0
      %v288 = vadd.f32 %v286, 0.0
      %v289 = vadd.f32 %v287, 0.0
      %v290 = vadd.f32 %v263, 0.0
      %v291 = vsel %vm281, 1.0, 0.0
      %v292 = vsel %vm282, 1.0, 0.0
      %v293 = vadd.f32 %v291, 0.0
      %v294 = vadd.f32 %v292, 0.0
      %v296 = vcombine.high %v272, %v272
      %v298 = vsel %vm281, %v272, 0.0
      %v299 = vsel %vm282, %v296, 0.0
      %v300 = vadd.f32 %v298, 0.0
      %v301 = vadd.f32 %v299, 0.0
      %v302 = vsel %vm216, %v288, 0.0
      %v303 = vsel %vm216, %v289, 0.0
      %v304 = vadd.f32 %v302, %v303
      %305 = vadd.xlane.f32.xlu0 %v304
      %v306 = vpop.xlane.xlu0 %305
      %v308 = vcombine.high %v290, %v290
      %v310 = vsel %vm216, %v290, 0.0
      %v311 = vsel %vm216, %v308, 0.0
      %v312 = vadd.f32 %v310, %v311
      %313 = vadd.xlane.f32.xlu0 %v312
      %v314 = vpop.xlane.xlu0 %313
      %v315 = vsel %vm216, %v293, 0.0
      %v316 = vsel %vm216, %v294, 0.0
      %v317 = vadd.f32 %v315, %v316
      %318 = vadd.xlane.f32.xlu0 %v317
      %v319 = vpop.xlane.xlu0 %318
      %v320 = vsel %vm216, %v300, 0.0
      %v321 = vsel %vm216, %v301, 0.0
      %v322 = vadd.f32 %v320, %v321
      %323 = vadd.xlane.f32.xlu0 %v322
      %v324 = vpop.xlane.xlu0 %323
      %v325 = vsub.f32 0.0, %v324
      %v326 = vlaneseq
      %v327 = vand.u32 %v326, 127
      %vm328 = vcmp.eq.s32.totalorder %v327, 0
      %v329 = vsel %vm328, 1, 0
      %vm330 = vcmp.eq.s32.totalorder %v329, 1
      %v331 = vsel %vm330, %v306, 0.0
      %vm332 = vcmp.eq.s32.totalorder %v327, 1
      %v333 = vsel %vm332, 1, 0
      %vm334 = vcmp.eq.s32.totalorder %v333, 1
      %v335 = vsel %vm334, %v314, 0.0
      %v336 = vadd.f32 %v331, %v335
      %vm337 = vcmp.eq.s32.totalorder %v327, 2
      %v338 = vsel %vm337, 1, 0
      %vm339 = vcmp.eq.s32.totalorder %v338, 1
      %v340 = vsel %vm339, %v319, 0.0
      %v341 = vadd.f32 %v336, %v340
      %vm342 = vcmp.eq.s32.totalorder %v327, 3
      %v343 = vsel %vm342, 1, 0
      %vm344 = vcmp.eq.s32.totalorder %v343, 1
      %v345 = vsel %vm344, %v325, 0.0
      %v346 = vadd.f32 %v341, %v345
      %v347 = vld [vmem:[%s202] sm:$0xf]
      %v348 = vadd.f32 %v347, %v346
      %vm349 = vcmask 27648
      %350 = vst.msk [vmem:[%s202] sm:$0xf] %vm349, %v348
      %p351 = scmp.lt.s32.totalorder %s17, 1
      %s352 = scalar_select %p351, %s17, 1
      %s353 = smul.addr %s352, 4
      %s354 = scalar_lea.vmem %s2, %s353
      // Predicated region
      $region33: #{dice_xent_loss.1} parent=27 // pred_check
        %p355 = pneg %p99
      $region34: #{dice_xent_loss.1} parent=27 // pred_check_branch
        %357 = sbr.rel (%p355) target = $region36
      $region35: #{dice_xent_loss.1} parent=27 // pred_region
        _
      $region36: #{dice_xent_loss.1} parent=27 // pred_fallthru
        _
    $region28: #{dice_xent_loss.1} parent=5 // pred_fallthru
      _
    %p358 = scmp.le.s32.totalorder 2, %s8
    // Predicated region
    $region37: #{dice_xent_loss.1} parent=5 // pred_check
      %p359 = pneg %p358
    $region38: #{dice_xent_loss.1} parent=5 // pred_check_branch
      %361 = sbr.rel (%p359) target = $region40
    $region39: #{dice_xent_loss.1} parent=5 // pred_region
      %s362 = ssub.s32 %s8, 2
      // Predicated region
      $region41: #{dice_xent_loss.1} parent=39 // pred_check
        %p363 = pneg %p105
      $region42: #{dice_xent_loss.1} parent=39 // pred_check_branch
        %365 = sbr.rel (%p363) target = $region44
      $region43: #{dice_xent_loss.1} parent=39 // pred_region
        %p366 = scmp.lt.s32.totalorder %s19, 1
        %s367 = scalar_select %p366, %s19, 1
        %s368 = smul.addr %s367, 4
        %s369 = scalar_lea.vmem %s2, %s368
      $region44: #{dice_xent_loss.1} parent=39 // pred_fallthru
        _
    $region40: #{dice_xent_loss.1} parent=5 // pred_fallthru
      _
  $region6: #{dice_xent_loss.1} parent=0 // loop_footer
    %s12 = sadd.s32 1, %s8
  $region7: #{dice_xent_loss.1} parent=0 // loop_footer_branch
    %7 = sbr.rel target = $region3
  $region8: #{dice_xent_loss.1} parent=0 // loop_exit
    _

</llo_original>
